<compile_context>
chip_gen: v7x
topology: tpu7x:2x2x1
jax: 0.10.0
libtpu: 0.0.40
codegen_flags: <defaults>
</compile_context>

<pallas_src>
import jax
import jax.numpy as jnp
from jax import lax
from jax.experimental import pallas as pl
from jax.experimental.pallas import tpu as pltpu

COSINE_WEIGHT = 0.7
MSE_WEIGHT = 0.3
NORMALIZE_EPS = 1e-12   # F.normalize default eps
COSSIM_EPS = 1e-8       # F.cosine_similarity default eps


def _loss_kernel(pred_ref, tgt_ref, w_ref, out_ref):
    """Per-tile body. out_ref: (2,) f32 SMEM accumulator [sum_cos, sum_sq_diff]."""
    i = pl.program_id(0)

    @pl.when(i == 0)
    def _init():
        out_ref[0] = jnp.float32(0.0)
        out_ref[1] = jnp.float32(0.0)

    # --- weighted_target = normalize(w * target, p=2, dim=1) ---------------
    w = w_ref[...].astype(jnp.float32)          # (1, D)   broadcast over rows
    tgt = tgt_ref[...].astype(jnp.float32)      # (TB, D)
    dp = w * tgt                                # (TB, D)
    dp_sq = jnp.sum(dp * dp, axis=1, keepdims=True)            # (TB, 1)
    dp_norm = jnp.sqrt(dp_sq)                                   # (TB, 1)
    # 1 / max(||dp||, eps)  ==  rsqrt(max(||dp||^2, eps^2))  (EUP, no full divide)
    inv_dp = lax.rsqrt(jnp.maximum(dp_sq, NORMALIZE_EPS * NORMALIZE_EPS))
    wt = dp * inv_dp                                            # weighted_target
    # ||weighted_target|| = ||dp|| * inv_dp  — no second (TB,D) reduce needed.
    wt_norm = dp_norm * inv_dp                                  # (TB, 1)

    # --- cosine similarity per row ------------------------------------------
    pred = pred_ref[...].astype(jnp.float32)    # (TB, D)
    num = jnp.sum(pred * wt, axis=1, keepdims=True)             # (TB, 1)
    pred_norm = jnp.sqrt(jnp.sum(pred * pred, axis=1, keepdims=True))
    cos = num / jnp.maximum(pred_norm * wt_norm, COSSIM_EPS)    # (TB, 1) narrow divide

    # --- squared error -------------------------------------------------------
    diff = pred - wt
    sq_sum = jnp.sum(diff * diff)

    # Zero-padded remainder rows contribute exactly 0 to both sums
    # (dp == 0 -> wt == 0; pred == 0 -> num == 0 -> cos == 0; diff == 0).
    out_ref[0] = out_ref[0] + jnp.sum(cos)
    out_ref[1] = out_ref[1] + sq_sum


def _choose_tile_rows(batch, dim, itemsize):
    """~2 MiB per input tile, multiple of 8 sublanes, capped at padded batch."""
    target_bytes = 2 * 1024 * 1024
    tb = target_bytes // max(1, dim * itemsize)
    tb = max(8, min(int(tb), 1024))
    tb = (tb // 8) * 8
    b8 = ((batch + 7) // 8) * 8
    return max(8, min(tb, b8))


def embedding_loss_with_weighted_target(predicted, target, weighted_tensor,
                                        cosine_weight=COSINE_WEIGHT,
                                        mse_weight=MSE_WEIGHT,
                                        tile_rows=None):
    """predicted, target: (B, D). weighted_tensor: (D,) or (1, D)."""
    predicted = jnp.asarray(predicted)
    target = jnp.asarray(target)
    w = jnp.asarray(weighted_tensor)
    if w.ndim == 1:
        w = w[None, :]                      # (1, D), broadcast inside the kernel

    B, D = predicted.shape
    itemsize = max(jnp.dtype(predicted.dtype).itemsize,
                   jnp.dtype(target.dtype).itemsize)
    tb = tile_rows if tile_rows is not None else _choose_tile_rows(B, D, itemsize)

    # Pad batch to a multiple of the tile; zero rows are exact no-ops (see kernel).
    pad_b = (-B) % tb
    if pad_b:
        predicted = jnp.pad(predicted, ((0, pad_b), (0, 0)))
        target = jnp.pad(target, ((0, pad_b), (0, 0)))
    n_tiles = (B + pad_b) // tb

    sums = pl.pallas_call(
        _loss_kernel,
        out_shape=jax.ShapeDtypeStruct((2,), jnp.float32),
        grid=(n_tiles,),
        in_specs=[
            pl.BlockSpec((tb, D), lambda i: (i, 0)),   # predicted tile
            pl.BlockSpec((tb, D), lambda i: (i, 0)),   # target tile
            pl.BlockSpec((1, D), lambda i: (0, 0)),    # weights (resident)
        ],
        out_specs=pl.BlockSpec(memory_space=pltpu.SMEM),
        compiler_params=pltpu.CompilerParams(
            dimension_semantics=("arbitrary",),        # accumulator axis
            vmem_limit_bytes=32 * 1024 * 1024,
        ),
    )(predicted, target, w)

    # Finalize with the TRUE counts (scalar ops, negligible).
    sum_cos, sum_sq = sums[0], sums[1]
    cosine_loss = 1.0 - sum_cos / jnp.float32(B)
    mse_loss = sum_sq / jnp.float32(B * D)
    total_loss = cosine_weight * cosine_loss + mse_weight * mse_loss
    # TODO(synk): optional 2-way partial-sum split across v7x's two TensorCores
    # (leading parallel grid axis + per-core partials combined here).
    return total_loss, cosine_loss, mse_loss


def _reference(predicted, target, weighted_tensor):
    # Pure-JAX reference mirroring the PyTorch forward.
    p = predicted.astype(jnp.float32)
    t = target.astype(jnp.float32)
    w = weighted_tensor.astype(jnp.float32)
    dp = w * t
    wt = dp / jnp.maximum(jnp.linalg.norm(dp, axis=1, keepdims=True), NORMALIZE_EPS)
    cos = jnp.sum(p * wt, axis=1) / jnp.maximum(
        jnp.linalg.norm(p, axis=1) * jnp.linalg.norm(wt, axis=1), COSSIM_EPS)
    cosine_loss = 1.0 - jnp.mean(cos)
    mse_loss = jnp.mean((p - wt) ** 2)
    return (COSINE_WEIGHT * cosine_loss + MSE_WEIGHT * mse_loss,
            cosine_loss, mse_loss)


if __name__ == "__main__":
    key = jax.random.PRNGKey(0)

    # Case 1: small shape consistent with the module (batch=8, hidden=32),
    # single-tile grid.
    k1, k2, k3, k4 = jax.random.split(key, 4)
    B, D = 8, 32
    predicted = jax.random.normal(k1, (B, D), dtype=jnp.float32)
    target = jax.random.normal(k2, (B, D), dtype=jnp.float32)
    weighted_tensor = jnp.linspace(0.5, 1.5, D, dtype=jnp.float32)

    total, cos_l, mse_l = embedding_loss_with_weighted_target(
        predicted, target, weighted_tensor)
    jax.block_until_ready(total)

    ref_total, ref_cos, ref_mse = _reference(predicted, target,
                                             weighted_tensor[None, :])
    assert jnp.allclose(total, ref_total, atol=1e-5), (total, ref_total)
    assert jnp.allclose(cos_l, ref_cos, atol=1e-5), (cos_l, ref_cos)
    assert jnp.allclose(mse_l, ref_mse, atol=1e-5), (mse_l, ref_mse)

    # Case 2: exercises the multi-step grid + remainder padding path
    # (B=40 with tile_rows=16 -> 3 grid steps, 8 zero-padded rows).
    B2, D2 = 40, 128
    predicted2 = jax.random.normal(k3, (B2, D2), dtype=jnp.float32)
    target2 = jax.random.normal(k4, (B2, D2), dtype=jnp.float32)
    weighted_tensor2 = jnp.linspace(0.25, 2.0, D2, dtype=jnp.float32)

    total2, cos2, mse2 = embedding_loss_with_weighted_target(
        predicted2, target2, weighted_tensor2, tile_rows=16)
    jax.block_until_ready(total2)

    r_total2, r_cos2, r_mse2 = _reference(predicted2, target2,
                                          weighted_tensor2[None, :])
    assert jnp.allclose(total2, r_total2, atol=1e-5), (total2, r_total2)
    assert jnp.allclose(cos2, r_cos2, atol=1e-5), (cos2, r_cos2)
    assert jnp.allclose(mse2, r_mse2, atol=1e-5), (mse2, r_mse2)

    print("KERNEL_OK")
</pallas_src>

<mosaic_0001>
module attributes {stable_mosaic.version = 11 : i64} {
  func.func @_loss_kernel(%arg0: i32, %arg1: memref<8x32xf32, #tpu.memory_space<vmem>>, %arg2: memref<8x32xf32, #tpu.memory_space<vmem>>, %arg3: memref<1x32xf32, #tpu.memory_space<vmem>>, %arg4: memref<2xf32, #tpu.memory_space<smem>>) attributes {dimension_semantics = [#tpu.dimension_semantics<arbitrary>], iteration_bounds = array<i64: 1>, scalar_prefetch = 0 : i64, scratch_operands = 0 : i64, tpu.core_type = #tpu.core_type<tc>, window_params = [{transform_indices = @transform_0, window_bounds = array<i64: 8, 32>}, {transform_indices = @transform_1, window_bounds = array<i64: 8, 32>}, {pipeline_mode = #tpu.pipeline_mode<synchronous>, transform_indices = @transform_2, window_bounds = array<i64: 1, 32>}, {transform_indices = @transform_3, window_bounds = array<i64: 2>}]} {
    %c0_i32 = arith.constant 0 : i32
    %0 = arith.cmpi eq, %arg0, %c0_i32 : i32
    %1 = arith.extui %0 : i1 to i32
    %c0_i32_0 = arith.constant 0 : i32
    %2 = arith.cmpi ne, %1, %c0_i32_0 : i32
    scf.if %2 {
      %cst_15 = arith.constant 0.000000e+00 : f32
      %c0_16 = arith.constant 0 : index
      %45 = memref.load %arg4[%c0_16] : memref<2xf32, #tpu.memory_space<smem>>
      memref.store %cst_15, %arg4[%c0_16] : memref<2xf32, #tpu.memory_space<smem>>
      %cst_17 = arith.constant 0.000000e+00 : f32
      %c1_18 = arith.constant 1 : index
      %46 = memref.load %arg4[%c1_18] : memref<2xf32, #tpu.memory_space<smem>>
      memref.store %cst_17, %arg4[%c1_18] : memref<2xf32, #tpu.memory_space<smem>>
    } else {
    }
    %c0 = arith.constant 0 : index
    %c0_1 = arith.constant 0 : index
    %3 = vector.load %arg3[%c0, %c0_1] : memref<1x32xf32, #tpu.memory_space<vmem>>, vector<1x32xf32>
    %c0_2 = arith.constant 0 : index
    %c0_3 = arith.constant 0 : index
    %4 = vector.load %arg2[%c0_2, %c0_3] : memref<8x32xf32, #tpu.memory_space<vmem>>, vector<8x32xf32>
    %5 = vector.broadcast %3 : vector<1x32xf32> to vector<8x32xf32>
    %6 = arith.mulf %5, %4 : vector<8x32xf32>
    %7 = arith.mulf %6, %6 : vector<8x32xf32>
    %cst = arith.constant dense<0.000000e+00> : vector<8xf32>
    %8 = vector.multi_reduction <add>, %7, %cst [1] : vector<8x32xf32> to vector<8xf32>
    %9 = vector.shape_cast %8 : vector<8xf32> to vector<8x1xf32>
    %10 = math.sqrt %9 : vector<8x1xf32>
    %cst_4 = arith.constant 1.000000e-24 : f32
    %11 = vector.broadcast %cst_4 : f32 to vector<8x1xf32>
    %12 = arith.maximumf %9, %11 : vector<8x1xf32>
    %13 = math.rsqrt %12 : vector<8x1xf32>
    %14 = vector.broadcast %13 : vector<8x1xf32> to vector<8x32xf32>
    %15 = arith.mulf %6, %14 : vector<8x32xf32>
    %16 = arith.mulf %10, %13 : vector<8x1xf32>
    %c0_5 = arith.constant 0 : index
    %c0_6 = arith.constant 0 : index
    %17 = vector.load %arg1[%c0_5, %c0_6] : memref<8x32xf32, #tpu.memory_space<vmem>>, vector<8x32xf32>
    %18 = arith.mulf %17, %15 : vector<8x32xf32>
    %cst_7 = arith.constant dense<0.000000e+00> : vector<8xf32>
    %19 = vector.multi_reduction <add>, %18, %cst_7 [1] : vector<8x32xf32> to vector<8xf32>
    %20 = vector.shape_cast %19 : vector<8xf32> to vector<8x1xf32>
    %21 = arith.mulf %17, %17 : vector<8x32xf32>
    %cst_8 = arith.constant dense<0.000000e+00> : vector<8xf32>
    %22 = vector.multi_reduction <add>, %21, %cst_8 [1] : vector<8x32xf32> to vector<8xf32>
    %23 = vector.shape_cast %22 : vector<8xf32> to vector<8x1xf32>
    %24 = math.sqrt %23 : vector<8x1xf32>
    %25 = arith.mulf %24, %16 : vector<8x1xf32>
    %cst_9 = arith.constant 9.99999993E-9 : f32
    %26 = vector.broadcast %cst_9 : f32 to vector<8x1xf32>
    %27 = arith.maximumf %25, %26 : vector<8x1xf32>
    %28 = arith.divf %20, %27 : vector<8x1xf32>
    %29 = arith.subf %17, %15 : vector<8x32xf32>
    %30 = arith.mulf %29, %29 : vector<8x32xf32>
    %31 = vector.shape_cast %30 : vector<8x32xf32> to vector<1x8x32xf32>
    %cst_10 = arith.constant dense<0.000000e+00> : vector<1xf32>
    %32 = vector.multi_reduction <add>, %31, %cst_10 [1, 2] : vector<1x8x32xf32> to vector<1xf32>
    %33 = vector.shape_cast %32 : vector<1xf32> to vector<1x1x1xf32>
    %34 = vector.extract %33[0, 0, 0] : f32 from vector<1x1x1xf32>
    %c0_11 = arith.constant 0 : index
    %35 = memref.load %arg4[%c0_11] : memref<2xf32, #tpu.memory_space<smem>>
    %36 = vector.shape_cast %28 : vector<8x1xf32> to vector<1x8x1xf32>
    %cst_12 = arith.constant dense<0.000000e+00> : vector<1xf32>
    %37 = vector.multi_reduction <add>, %36, %cst_12 [1, 2] : vector<1x8x1xf32> to vector<1xf32>
    %38 = vector.shape_cast %37 : vector<1xf32> to vector<1x1x1xf32>
    %39 = vector.extract %38[0, 0, 0] : f32 from vector<1x1x1xf32>
    %40 = arith.addf %35, %39 : f32
    %c0_13 = arith.constant 0 : index
    %41 = memref.load %arg4[%c0_13] : memref<2xf32, #tpu.memory_space<smem>>
    memref.store %40, %arg4[%c0_13] : memref<2xf32, #tpu.memory_space<smem>>
    %c1 = arith.constant 1 : index
    %42 = memref.load %arg4[%c1] : memref<2xf32, #tpu.memory_space<smem>>
    %43 = arith.addf %42, %34 : f32
    %c1_14 = arith.constant 1 : index
    %44 = memref.load %arg4[%c1_14] : memref<2xf32, #tpu.memory_space<smem>>
    memref.store %43, %arg4[%c1_14] : memref<2xf32, #tpu.memory_space<smem>>
    return
  }
  func.func @transform_0(%arg0: i32) -> (i32, i32) {
    %c0_i32 = arith.constant 0 : i32
    %c0_i32_0 = arith.constant 0 : i32
    return %arg0, %c0_i32 : i32, i32
  }
  func.func @transform_1(%arg0: i32) -> (i32, i32) {
    %c0_i32 = arith.constant 0 : i32
    %c0_i32_0 = arith.constant 0 : i32
    return %arg0, %c0_i32 : i32, i32
  }
  func.func @transform_2(%arg0: i32) -> (i32, i32) {
    %c0_i32 = arith.constant 0 : i32
    %c0_i32_0 = arith.constant 0 : i32
    %c0_i32_1 = arith.constant 0 : i32
    return %c0_i32, %c0_i32_0 : i32, i32
  }
  func.func @transform_3(%arg0: i32) -> i32 {
    %c0_i32 = arith.constant 0 : i32
    %c0_i32_0 = arith.constant 0 : i32
    return %c0_i32 : i32
  }
}

</mosaic_0001>

<llo_original>
// kernel: tpu_custom_call.1
$region0: #{tpu_custom_call.1}
  #allocation0 [shape = 'u32[]', space=smem, size = 0x4, offset = 0x4, fixed_abs, tag = 'smem constant byte address 0x4 - core index']
  #allocation1 [shape = 'u32[144,128]{1,0:T(1,128)}', space=vmem, size = 0x12000, scoped, tag = 'internal scratch']
  %s0 = inlined_call_operand.hbm [shape: f32[8,32], index: 0, kind: input, shape index: {}]
  %s1 = inlined_call_operand.hbm [shape: f32[8,32], index: 1, kind: input, shape index: {}]
  %s2 = inlined_call_operand.vmem [shape: f32[1,32], index: 2, kind: input, shape index: {}]
  %s3 = inlined_call_operand.hbm [shape: f32[2], index: 3, kind: output, shape index: {}]
  %s4 = sld [smem:[#allocation0]]
  $region34: #{tpu_custom_call.1} parent=0
    _
  %s6 = ssub.s32 1, %s4
  %s7 = scalar_select 0, %s6, %s4
  $region1: #{tpu_custom_call.1} parent=0
    #allocation2 [shape = 'u8[4096]{0}', space=vmem, size = 0x1000, scoped, tag = 'input window, operand 0, single buffered']
    #allocation3 [shape = 's32[1]{0}', space=sflag, size = 0x4, scoped, tag = 'scoped memory for tpu_custom_call.1']
    #allocation4 [shape = 's32[1]{0}', space=sflag, size = 0x4, scoped, tag = 'scoped memory for tpu_custom_call.1']
    #allocation5 [shape = 'u8[4096]{0}', space=vmem, size = 0x1000, scoped, tag = 'input window, operand 1, single buffered']
    #allocation6 [shape = 's32[1]{0}', space=sflag, size = 0x4, scoped, tag = 'scoped memory for tpu_custom_call.1']
    #allocation7 [shape = 'u8[512]{0}', space=smem, size = 0x200, scoped, tag = 'output window, operand 0, single buffered']
    %8 = vsyncpa [#allocation3], 0
    %9 = vsyncpa [#allocation6], 0
    %10 = vsyncpa [#allocation4], 0
    // Predicated region
    $region2: #{tpu_custom_call.1} parent=1 // pred_check
      _
    $region3: #{tpu_custom_call.1} parent=1 // pred_check_branch
      %12 = sbr.rel (0) target = $region5
    $region4: #{tpu_custom_call.1} parent=1 // pred_region
      %s14 = ssub.s32 128, 128
      %15 = vsyncadd [#allocation3], %s14
      %s17 = sshll.u32 [#allocation2], 4
      %s18 = int_to_ptr.vmem [resolvable:$true] %s17
      %20 = dma.hbm_to_vmem [thread:$0]  %s0, 128, %s18, [#allocation3]
    $region5: #{tpu_custom_call.1} parent=1 // pred_fallthru
      _
    // Predicated region
    $region6: #{tpu_custom_call.1} parent=1 // pred_check
      _
    $region7: #{tpu_custom_call.1} parent=1 // pred_check_branch
      %22 = sbr.rel (0) target = $region9
    $region8: #{tpu_custom_call.1} parent=1 // pred_region
      %s24 = ssub.s32 128, 128
      %25 = vsyncadd [#allocation6], %s24
      %s27 = sshll.u32 [#allocation5], 4
      %s28 = int_to_ptr.vmem [resolvable:$true] %s27
      %30 = dma.hbm_to_vmem [thread:$0]  %s1, 128, %s28, [#allocation6]
    $region9: #{tpu_custom_call.1} parent=1 // pred_fallthru
      _
    // Predicated region
    $region10: #{tpu_custom_call.1} parent=1 // pred_check
      _
    $region11: #{tpu_custom_call.1} parent=1 // pred_check_branch
      %32 = sbr.rel (0) target = $region13
    $region12: #{tpu_custom_call.1} parent=1 // pred_region
      _
    $region13: #{tpu_custom_call.1} parent=1 // pred_fallthru
      _
    // Predicated region
    $region14: #{tpu_custom_call.1} parent=1 // pred_check
      _
    $region15: #{tpu_custom_call.1} parent=1 // pred_check_branch
      %34 = sbr.rel (0) target = $region17
    $region16: #{tpu_custom_call.1} parent=1 // pred_region
      %35 = dma.done [#allocation3], 128
    $region17: #{tpu_custom_call.1} parent=1 // pred_fallthru
      _
    // Predicated region
    $region18: #{tpu_custom_call.1} parent=1 // pred_check
      _
    $region19: #{tpu_custom_call.1} parent=1 // pred_check_branch
      %37 = sbr.rel (0) target = $region21
    $region20: #{tpu_custom_call.1} parent=1 // pred_region
      %38 = dma.done [#allocation6], 128
    $region21: #{tpu_custom_call.1} parent=1 // pred_fallthru
      _
    %p39 = scmp.eq.s32.totalorder 0, 0
    // Predicated region
    $region22: #{tpu_custom_call.1} parent=1 // pred_check
      %p40 = pneg %p39
    $region23: #{tpu_custom_call.1} parent=1 // pred_check_branch
      %42 = sbr.rel (%p40) target = $region25
    $region24: #{tpu_custom_call.1} parent=1 // pred_region
      %s43 = scalar_lea.smem [#allocation7], 0
      %44 = sst [smem:[%s43]] 0.0
      %s45 = scalar_lea.smem [#allocation7], 1
      %46 = sst [smem:[%s45]] 0.0
    $region25: #{tpu_custom_call.1} parent=1 // pred_fallthru
      _
    %v47 = vld [vmem:[%s2] sm:$0x1]
    %v48 = vld [vmem:[#allocation5] sm:$0xff]
    %v50 = vlaneseq
    %v51 = vshrl.u32 %v50, 7
    %v52 = vsub.s32 0, %v51
    %v53 = vrot.slane %v47, %v52
    %v55 = vmul.f32 %v53, %v48
    %v56 = vmul.f32 %v55, %v55
    %vm57 = vcmask 261120
    %v58 = vsel %vm57, %v56, 0.0
    %59 = vadd.xlane.f32.xlu0 %v58
    %v60 = vpop.xlane.xlu0 %59
    %v61 = vrsqrt.pop %v60
    %v62 = vmul.f32 %v60, %v61
    %vm63 = vcmp.eq.f32.partialorder %v60, inf
    %v64 = vsel %vm63, %v60, %v62
    %vm65 = vcmp.eq.f32.partialorder %v60, 0.0
    %v66 = vand.u32 %v60, 2147483648
    %v67 = vsel %vm65, %v66, %v64
    %v68 = vmax.f32 %v60, 1e-24
    %v69 = vrsqrt.pop %v68
    %v70 = vmul.f32 %v55, %v69
    %v71 = vmul.f32 %v67, %v69
    %v72 = vld [vmem:[#allocation2] sm:$0xff]
    %v73 = vmul.f32 %v72, %v70
    %v74 = vsel %vm57, %v73, 0.0
    %75 = vadd.xlane.f32.xlu0 %v74
    %v76 = vpop.xlane.xlu0 %75
    %v77 = vmul.f32 %v72, %v72
    %v78 = vsel %vm57, %v77, 0.0
    %79 = vadd.xlane.f32.xlu0 %v78
    %v80 = vpop.xlane.xlu0 %79
    %v81 = vrsqrt.pop %v80
    %v82 = vmul.f32 %v80, %v81
    %vm83 = vcmp.eq.f32.partialorder %v80, inf
    %v84 = vsel %vm83, %v80, %v82
    %vm85 = vcmp.eq.f32.partialorder %v80, 0.0
    %v86 = vand.u32 %v80, 2147483648
    %v87 = vsel %vm85, %v86, %v84
    %v88 = vmul.f32 %v87, %v71
    %v89 = vmax.f32 %v88, 1e-08
    %v90 = vrcp.pop %v89
    %v91 = vmul.f32 %v76, %v90
    %v92 = vsub.f32 %v72, %v70
    %v93 = vmul.f32 %v92, %v92
    %v94 = vsel %vm57, %v93, 0.0
    %95 = vadd.xlane.f32.xlu0 %v94
    %v96 = vpop.xlane.xlu0 %95
    %v97 = vrot.slane %v96, 4
    %v98 = vadd.f32 %v96, %v97
    %v99 = vrot.slane %v98, 2
    %v100 = vadd.f32 %v98, %v99
    %v101 = vrot.slane %v100, 1
    %v102 = vadd.f32 %v100, %v101
    %s103 = vtos %v102
    %s104 = sld [smem:[#allocation7]]
    %vm105 = vcmask 7168
    %v106 = vsel %vm105, %v91, 0.0
    %107 = vadd.xlane.f32.xlu0 %v106
    %v108 = vpop.xlane.xlu0 %107
    %v109 = vrot.slane %v108, 4
    %v110 = vadd.f32 %v108, %v109
    %v111 = vrot.slane %v110, 2
    %v112 = vadd.f32 %v110, %v111
    %v113 = vrot.slane %v112, 1
    %v114 = vadd.f32 %v112, %v113
    %s115 = vtos %v114
    %s116 = sadd.f32 %s104, %s115
    %s117 = scalar_lea.smem [#allocation7], 0
    %118 = sst [smem:[%s117]] %s116
    %s119 = sld [smem:[#allocation7 + $0x1]]
    %s120 = sadd.f32 %s119, %s103
    %s121 = scalar_lea.smem [#allocation7], 1
    %122 = sst [smem:[%s121]] %s120
    // Predicated region
    $region26: #{tpu_custom_call.1} parent=1 // pred_check
      _
    $region27: #{tpu_custom_call.1} parent=1 // pred_check_branch
      %124 = sbr.rel (0) target = $region29
    $region28: #{tpu_custom_call.1} parent=1 // pred_region
      %s126 = ssub.s32 16, 16
      %127 = vsyncadd [#allocation4], %s126
      %130 = dma.smem_to_hbm [#allocation7], 16, %s3, [#allocation4]
    $region29: #{tpu_custom_call.1} parent=1 // pred_fallthru
      _
    // Predicated region
    $region30: #{tpu_custom_call.1} parent=1 // pred_check
      _
    $region31: #{tpu_custom_call.1} parent=1 // pred_check_branch
      %132 = sbr.rel (0) target = $region33
    $region32: #{tpu_custom_call.1} parent=1 // pred_region
      %133 = dma.done [#allocation4], 16
    $region33: #{tpu_custom_call.1} parent=1 // pred_fallthru
      _
    %134 = sfence
    %135 = vsyncpa [#allocation3], 1
    %136 = vsyncpa [#allocation6], 1
    %137 = vsyncpa [#allocation4], 1

</llo_original>
